<compile_context>
chip_gen: v6e
topology: v6e:2x2x1
jax: 0.10.0
libtpu: 0.0.40
codegen_flags: <defaults>
</compile_context>

<pallas_src>
import functools
import math

import jax
import jax.numpy as jnp
from jax import lax
from jax.experimental import pallas as pl
from jax.experimental.pallas import tpu as pltpu


def _affine_grid_kernel(theta_ref, out_ref, *, out_h, out_w, rows_per_group,
                        tile_b, tile_g, batch_axis, group_axis, align_corners):
    # theta_ref: SMEM (6*B,)  flat [t00,t01,t02,t10,t11,t12] per batch
    # out_ref:   VMEM (tile_b, tile_g, rows_per_group * 2 * out_w)
    w2 = 2 * out_w
    lane_w = rows_per_group * w2

    # Normalization constants (static): coord(axis_index) = s*index + o.
    if align_corners:
        sx = 2.0 / float(max(out_w - 1, 1))
        sy = 2.0 / float(max(out_h - 1, 1))
        ox = -1.0
        oy = -1.0
    else:  # align_corners=False (PyTorch >= 1.3 default): (2j+1)/W - 1
        sx = 2.0 / float(out_w)
        sy = 2.0 / float(out_h)
        ox = 1.0 / float(out_w) - 1.0
        oy = 1.0 / float(out_h) - 1.0

    # Lane decomposition (computed once per tile): lane -> (local_row, col, x|y).
    lane = lax.broadcasted_iota(jnp.int32, (1, lane_w), 1)
    if rows_per_group > 1:
        local_row = lane // w2
        rem = lane - local_row * w2
        local_row_f = local_row.astype(jnp.float32)
    else:
        rem = lane
        local_row_f = None
    col_f = (rem >> 1).astype(jnp.float32)          # column index j
    is_x = (rem & 1) == 0                           # channel parity: even lane -> x

    # Global base image-row of every group-row in this tile: (tile_g, 1).
    group_idx = (lax.broadcasted_iota(jnp.int32, (tile_g, 1), 0)
                 + pl.program_id(group_axis) * tile_g)
    base_row_f = (group_idx * rows_per_group).astype(jnp.float32)

    batch0 = pl.program_id(batch_axis) * tile_b
    for b in range(tile_b):                         # static unroll, tile_b <= 16
        off = (batch0 + b) * 6                      # tile_b divides B -> always in range
        t00 = theta_ref[off + 0]
        t01 = theta_ref[off + 1]
        t02 = theta_ref[off + 2]
        t10 = theta_ref[off + 3]
        t11 = theta_ref[off + 4]
        t12 = theta_ref[off + 5]

        # coordinate(i, j) = A*j + B*i + C with normalization folded in (scalar path).
        ax = t00 * sx
        bx = t01 * sy
        cx = t02 + t00 * ox + t01 * oy
        ay = t10 * sx
        by = t11 * sy
        cy = t12 + t10 * ox + t11 * oy

        # Per-lane coefficient vectors, selected once by channel parity.
        a_l = jnp.where(is_x, ax, ay)               # coeff of column j
        b_l = jnp.where(is_x, bx, by)               # coeff of row i
        c_l = jnp.where(is_x, cx, cy)               # constant
        lane_term = a_l * col_f + c_l                # (1, lane_w), hoisted over rows
        if rows_per_group > 1:
            lane_term = lane_term + b_l * local_row_f

        # Vector body: one mul + one add per output element.
        out_ref[b] = b_l * base_row_f + lane_term    # (tile_g, lane_w)


def _largest_divisor_leq(n, cap):
    cap = max(1, min(n, cap))
    for d in range(cap, 0, -1):
        if n % d == 0:
            return d
    return 1


def _target_block_bytes():
    """~2-4 MiB output blocks, scaled down if this chip's VMEM is small (v7x: 64 MiB)."""
    default = 4 << 20
    try:
        vmem = int(pltpu.get_tpu_info().vmem_capacity_bytes)
        return int(min(default, max(1 << 20, vmem // 16)))
    except Exception:
        return default


def _choose_tiles(num_b, num_g, lane_width, target_bytes, max_unroll=16):
    """Pick (tile_b, tile_g): ~target-sized blocks and >= 2 parallel steps when possible."""
    row_bytes = lane_width * 4
    batch_bytes = max(1, num_g * row_bytes)
    if batch_bytes <= target_bytes:
        tile_g = num_g                              # full dim: always legal
        cap = min(num_b, max_unroll, max(1, target_bytes // batch_bytes))
        tile_b = _largest_divisor_leq(num_b, cap)   # pack batches per step
    else:
        tile_b = 1
        if num_g <= 8:
            tile_g = num_g
        else:
            want = max(8, (target_bytes // row_bytes) // 8 * 8)
            tile_g = min(num_g, want)               # multiple of 8; cdiv handles tail

    def _steps(tb, tg):
        return (num_b // tb) * pl.cdiv(num_g, tg)

    # v7x megacore: make sure both TensorCores get work when the problem allows.
    if _steps(tile_b, tile_g) < 2:
        if num_b >= 2:
            tile_b = _largest_divisor_leq(num_b, (num_b + 1) // 2)
        elif num_g >= 16:
            tile_g = max(8, ((num_g // 2 + 7) // 8) * 8)
    return tile_b, tile_g


def affine_grid_gen(theta, out_h=256, out_w=256, out_ch=3, align_corners=False):
    """JAX/Pallas equivalent of AffineGridGen.forward == F.affine_grid(theta, (B, C, H, W)).

    theta: (B, 2, 3) (or anything reshapeable to (-1, 2, 3)), float32.
    Returns (B, out_h, out_w, 2) float32 sampling grid.
    out_ch only sets the PyTorch out_size; it does not affect the grid values.
    """
    theta = jnp.asarray(theta, jnp.float32)
    if theta.ndim != 3 or theta.shape[1:] != (2, 3):
        theta = theta.reshape(-1, 2, 3)
    b = theta.shape[0]
    theta_flat = theta.reshape(b * 6)               # flat 1-D SMEM layout (no (B,6) padding)

    w2 = 2 * out_w
    # Fold r image rows into the lane dim so the last block dim is a multiple of
    # 128 (unmasked full-lane stores) whenever H allows it.
    if w2 % 128 == 0:
        r = 1
    else:
        r = 128 // math.gcd(w2, 128)
        if out_h % r != 0:
            r = 1                                   # fall back to masked stores
    num_groups = out_h // r
    lane_w = r * w2

    target_bytes = _target_block_bytes()
    tile_b, tile_g = _choose_tiles(b, num_groups, lane_w, target_bytes)
    block_bytes = tile_b * tile_g * lane_w * 4

    nb = b // tile_b                                # tile_b divides b
    ng = pl.cdiv(num_groups, tile_g)                # partial tail handled by Pallas
    # Put the longer axis first so megacore sharding (v7x) splits it.
    if ng >= nb:
        grid = (ng, nb)
        group_axis, batch_axis = 0, 1
        out_index_map = lambda ig, ib: (ib, ig, 0)
    else:
        grid = (nb, ng)
        batch_axis, group_axis = 0, 1
        out_index_map = lambda ib, ig: (ib, ig, 0)

    kernel = functools.partial(
        _affine_grid_kernel, out_h=out_h, out_w=out_w, rows_per_group=r,
        tile_b=tile_b, tile_g=tile_g, batch_axis=batch_axis,
        group_axis=group_axis, align_corners=align_corners)

    vmem_limit = int(min(48 << 20, max(16 << 20, 4 * block_bytes + (2 << 20))))

    slab = pl.pallas_call(
        kernel,
        out_shape=jax.ShapeDtypeStruct((b, num_groups, lane_w), jnp.float32),
        grid_spec=pltpu.PrefetchScalarGridSpec(
            num_scalar_prefetch=0,
            grid=grid,
            in_specs=[
                # whole flat theta resident in SMEM; read on the scalar path only
                pl.BlockSpec(memory_space=pltpu.MemorySpace.SMEM),
            ],
            out_specs=pl.BlockSpec((tile_b, tile_g, lane_w), out_index_map),
        ),
        compiler_params=pltpu.CompilerParams(
            dimension_semantics=("parallel", "parallel"),
            vmem_limit_bytes=vmem_limit),
    )(theta_flat)

    # Free metadata reshape: (B, H/r, r*2W) -> (B, H, W, 2).
    return slab.reshape(b, out_h, out_w, 2)


def _affine_grid_ref(theta, out_h, out_w, align_corners=False):
    # pure-JAX reference for validation
    if align_corners:
        x = jnp.linspace(-1.0, 1.0, out_w, dtype=jnp.float32)
        y = jnp.linspace(-1.0, 1.0, out_h, dtype=jnp.float32)
    else:
        x = (2.0 * jnp.arange(out_w, dtype=jnp.float32) + 1.0) / out_w - 1.0
        y = (2.0 * jnp.arange(out_h, dtype=jnp.float32) + 1.0) / out_h - 1.0
    xx, yy = jnp.meshgrid(x, y)                        # (H, W)
    base = jnp.stack([xx, yy, jnp.ones_like(xx)], -1)  # (H, W, 3)
    return jnp.einsum('bij,hwj->bhwi', theta, base)    # (B, H, W, 2)


if __name__ == "__main__":
    key = jax.random.PRNGKey(0)
    # (B, H, W, align_corners):
    #   case 0: 2W multiple of 128, batch-split grid
    #   case 1: small W -> lane-dense grouped layout (r=8), odd batch
    #   case 2: B=1 -> megacore split along H groups
    #   case 3: legacy align_corners=True convention
    cases = [(2, 16, 128, False), (3, 24, 40, False), (1, 32, 64, False), (2, 16, 128, True)]
    for idx, (B, OUT_H, OUT_W, AC) in enumerate(cases):
        k = jax.random.fold_in(key, idx)
        identity = jnp.tile(
            jnp.array([[1.0, 0.0, 0.0], [0.0, 1.0, 0.0]], jnp.float32), (B, 1, 1))
        theta = identity + 0.1 * jax.random.normal(k, (B, 2, 3), jnp.float32)

        out = affine_grid_gen(theta, out_h=OUT_H, out_w=OUT_W, out_ch=3, align_corners=AC)
        out = jax.block_until_ready(out)

        ref = _affine_grid_ref(theta, OUT_H, OUT_W, align_corners=AC)
        assert out.shape == (B, OUT_H, OUT_W, 2), out.shape
        err = float(jnp.max(jnp.abs(out - ref)))
        assert jnp.allclose(out, ref, atol=1e-5, rtol=1e-5), err

    print("KERNEL_OK")
</pallas_src>

<mosaic_0001>
module attributes {stable_mosaic.version = 11 : i64} {
  func.func @_affine_grid_kernel(%arg0: i32, %arg1: i32, %arg2: memref<12xf32, #tpu.memory_space<smem>>, %arg3: memref<1x16x256xf32, #tpu.memory_space<vmem>>) attributes {dimension_semantics = [#tpu.dimension_semantics<parallel>, #tpu.dimension_semantics<parallel>], iteration_bounds = array<i64: 2, 1>, scalar_prefetch = 0 : i64, scratch_operands = 0 : i64, tpu.core_type = #tpu.core_type<tc>, window_params = [{transform_indices = @transform_0, window_bounds = array<i64: 12>}, {transform_indices = @transform_1, window_bounds = array<i64: 1, 16, 256>}]} {
    %0 = tpu.iota {dimensions = array<i32: 1>} : vector<1x256xi32>
    %c1_i32 = arith.constant 1 : i32
    %1 = vector.broadcast %c1_i32 : i32 to vector<1x256xi32>
    %2 = arith.shrsi %0, %1 : vector<1x256xi32>
    %3 = arith.sitofp %2 : vector<1x256xi32> to vector<1x256xf32>
    %c1_i32_0 = arith.constant 1 : i32
    %4 = vector.broadcast %c1_i32_0 : i32 to vector<1x256xi32>
    %5 = arith.andi %0, %4 : vector<1x256xi32>
    %c0_i32 = arith.constant 0 : i32
    %6 = vector.broadcast %c0_i32 : i32 to vector<1x256xi32>
    %7 = arith.cmpi eq, %5, %6 : vector<1x256xi32>
    %8 = tpu.iota {dimensions = array<i32: 0>} : vector<16x1xi32>
    %c16_i32 = arith.constant 16 : i32
    %9 = arith.muli %arg1, %c16_i32 : i32
    %10 = vector.broadcast %9 : i32 to vector<16x1xi32>
    %11 = arith.addi %8, %10 : vector<16x1xi32>
    %c1_i32_1 = arith.constant 1 : i32
    %12 = vector.broadcast %c1_i32_1 : i32 to vector<16x1xi32>
    %13 = arith.muli %11, %12 : vector<16x1xi32>
    %14 = arith.sitofp %13 : vector<16x1xi32> to vector<16x1xf32>
    %c1_i32_2 = arith.constant 1 : i32
    %15 = arith.muli %arg0, %c1_i32_2 : i32
    %c0_i32_3 = arith.constant 0 : i32
    %16 = arith.addi %15, %c0_i32_3 : i32
    %c6_i32 = arith.constant 6 : i32
    %17 = arith.muli %16, %c6_i32 : i32
    %c0_i32_4 = arith.constant 0 : i32
    %18 = arith.addi %17, %c0_i32_4 : i32
    %19 = arith.index_cast %18 : i32 to index
    %20 = memref.load %arg2[%19] : memref<12xf32, #tpu.memory_space<smem>>
    %c1_i32_5 = arith.constant 1 : i32
    %21 = arith.addi %17, %c1_i32_5 : i32
    %22 = arith.index_cast %21 : i32 to index
    %23 = memref.load %arg2[%22] : memref<12xf32, #tpu.memory_space<smem>>
    %c2_i32 = arith.constant 2 : i32
    %24 = arith.addi %17, %c2_i32 : i32
    %25 = arith.index_cast %24 : i32 to index
    %26 = memref.load %arg2[%25] : memref<12xf32, #tpu.memory_space<smem>>
    %c3_i32 = arith.constant 3 : i32
    %27 = arith.addi %17, %c3_i32 : i32
    %28 = arith.index_cast %27 : i32 to index
    %29 = memref.load %arg2[%28] : memref<12xf32, #tpu.memory_space<smem>>
    %c4_i32 = arith.constant 4 : i32
    %30 = arith.addi %17, %c4_i32 : i32
    %31 = arith.index_cast %30 : i32 to index
    %32 = memref.load %arg2[%31] : memref<12xf32, #tpu.memory_space<smem>>
    %c5_i32 = arith.constant 5 : i32
    %33 = arith.addi %17, %c5_i32 : i32
    %34 = arith.index_cast %33 : i32 to index
    %35 = memref.load %arg2[%34] : memref<12xf32, #tpu.memory_space<smem>>
    %cst = arith.constant 1.562500e-02 : f32
    %36 = arith.mulf %20, %cst : f32
    %cst_6 = arith.constant 1.250000e-01 : f32
    %37 = arith.mulf %23, %cst_6 : f32
    %cst_7 = arith.constant -0.9921875 : f32
    %38 = arith.mulf %20, %cst_7 : f32
    %39 = arith.addf %26, %38 : f32
    %cst_8 = arith.constant -9.375000e-01 : f32
    %40 = arith.mulf %23, %cst_8 : f32
    %41 = arith.addf %39, %40 : f32
    %cst_9 = arith.constant 1.562500e-02 : f32
    %42 = arith.mulf %29, %cst_9 : f32
    %cst_10 = arith.constant 1.250000e-01 : f32
    %43 = arith.mulf %32, %cst_10 : f32
    %cst_11 = arith.constant -0.9921875 : f32
    %44 = arith.mulf %29, %cst_11 : f32
    %45 = arith.addf %35, %44 : f32
    %cst_12 = arith.constant -9.375000e-01 : f32
    %46 = arith.mulf %32, %cst_12 : f32
    %47 = arith.addf %45, %46 : f32
    %48 = vector.broadcast %36 : f32 to vector<1x256xf32>
    %49 = vector.broadcast %42 : f32 to vector<1x256xf32>
    %50 = arith.select %7, %48, %49 : vector<1x256xi1>, vector<1x256xf32>
    %51 = vector.broadcast %37 : f32 to vector<1x256xf32>
    %52 = vector.broadcast %43 : f32 to vector<1x256xf32>
    %53 = arith.select %7, %51, %52 : vector<1x256xi1>, vector<1x256xf32>
    %54 = vector.broadcast %41 : f32 to vector<1x256xf32>
    %55 = vector.broadcast %47 : f32 to vector<1x256xf32>
    %56 = arith.select %7, %54, %55 : vector<1x256xi1>, vector<1x256xf32>
    %57 = arith.mulf %50, %3 : vector<1x256xf32>
    %58 = arith.addf %57, %56 : vector<1x256xf32>
    %59 = vector.broadcast %53 : vector<1x256xf32> to vector<16x256xf32>
    %60 = vector.broadcast %14 : vector<16x1xf32> to vector<16x256xf32>
    %61 = arith.mulf %59, %60 : vector<16x256xf32>
    %62 = vector.broadcast %58 : vector<1x256xf32> to vector<16x256xf32>
    %63 = arith.addf %61, %62 : vector<16x256xf32>
    %c0 = arith.constant 0 : index
    %c0_13 = arith.constant 0 : index
    %c0_14 = arith.constant 0 : index
    %64 = vector.load %arg3[%c0, %c0_13, %c0_14] : memref<1x16x256xf32, #tpu.memory_space<vmem>>, vector<1x16x256xf32>
    %65 = vector.shape_cast %64 : vector<1x16x256xf32> to vector<16x256xf32>
    %66 = vector.shape_cast %63 : vector<16x256xf32> to vector<1x16x256xf32>
    tpu.vector_store %arg3[%c0, %c0_13, %c0_14], %66 {strides = array<i32>} : memref<1x16x256xf32, #tpu.memory_space<vmem>>, vector<1x16x256xf32>,
    return
  }
  func.func @transform_0(%arg0: i32, %arg1: i32) -> i32 {
    %c0_i32 = arith.constant 0 : i32
    %c0_i32_0 = arith.constant 0 : i32
    return %c0_i32 : i32
  }
  func.func @transform_1(%arg0: i32, %arg1: i32) -> (i32, i32, i32) {
    %c0_i32 = arith.constant 0 : i32
    %c0_i32_0 = arith.constant 0 : i32
    return %arg0, %arg1, %c0_i32 : i32, i32, i32
  }
}

</mosaic_0001>

<llo_original>
// kernel: tpu_custom_call.1
$region0: #{tpu_custom_call.1}
  #allocation0 [shape = 'u32[]', space=smem, size = 0x4, offset = 0x4, fixed_abs, tag = 'smem constant byte address 0x4 - core index']
  #allocation1 [shape = 'u32[144,128]{1,0:T(1,128)}', space=vmem, size = 0x12000, scoped, tag = 'internal scratch']
  %s0 = inlined_call_operand.hbm [shape: f32[12], index: 0, kind: input, shape index: {}]
  %s1 = inlined_call_operand.hbm [shape: f32[2,16,256], index: 1, kind: output, shape index: {}]
  %s2 = sld [smem:[#allocation0]]
  $region41: #{tpu_custom_call.1} parent=0
    _
  %s4 = ssub.s32 1, %s2
  %s5 = scalar_select 0, %s4, %s2
  $region1: #{tpu_custom_call.1} parent=0
    #allocation2 [shape = 'u8[512]{0}', space=smem, size = 0x200, scoped, tag = 'input window, operand 0, single buffered']
    #allocation3 [shape = 's32[2]{0}', space=sflag, size = 0x8, scoped, tag = 'scoped memory for tpu_custom_call.1']
    #allocation4 [shape = 's32[2]{0}', space=sflag, size = 0x8, scoped, tag = 'scoped memory for tpu_custom_call.1']
    #allocation5 [shape = 'u8[32768]{0}', space=vmem, size = 0x8000, scoped, tag = 'output window, operand 0']
    %6 = vsyncpa [#allocation4], 0
    %7 = vsyncpa [#allocation3], 0
    %s8 = scalar_lea.sflag [#allocation3], 1
    %9 = vsyncpa %s8, 0
    loop: start=0, step=1, limit=4
    $region2: #{tpu_custom_call.1} parent=1 // loop_pre_header
      _
    $region3: #{tpu_custom_call.1} parent=1 // loop_header
      %s11 = sphi 0, %s15
      %p12 = scmp.ge.s32.totalorder %s11, 4
      %s18 = sphi 0, %s30
      %s19 = sphi 0, %s26
      %s20 = sphi 0, %s18
      %s21 = sphi 0, %s19
      %s22 = sphi 0, %s20
      %s23 = sphi 0, %s21
      %s31 = sphi 0, %s31
      %s33 = sphi 0, %s31
      %s34 = sphi 0, %s33
      %s48 = sphi 0, %s34
      %s56 = sphi 0, %s58
      %s59 = sphi 0, %s56
      %s60 = sphi 0, %s59
      %s76 = sphi 0, %s60
    $region4: #{tpu_custom_call.1} parent=1 // loop_header_branch
      %14 = sbr.rel (%p12) target = $region8
    $region5: #{tpu_custom_call.1} parent=1 // loop_body
      %s16 = ssub.s32 %s11, 1
      %s17 = ssub.s32 %s11, 2
      %s24 = sadd.s32 1, %s19
      %p25 = scmp.ge.s32.totalorder %s24, 1
      %s26 = scalar_select %p25, 0, %s24
      %s27 = sadd.s32 1, %s18
      %s28 = scalar_select %p25, %s27, %s18
      %p29 = scmp.ge.s32.totalorder %s28, 2
      %s30 = scalar_select %p29, 0, %s28
      %s32 = sadd.s32 %s31, 1
      %p35 = scmp.eq.s32.totalorder %s11, 1
      %p36 = scmp.ne.s32.totalorder %s31, %s33
      %p37 = scmp.eq.s32.totalorder %s11, 0
      %p38 = por %p36, %p37
      %p39 = scmp.ne.s32.totalorder %s31, %s33
      %p40 = scmp.eq.s32.totalorder %s16, 1
      %p41 = por %p39, %p40
      %p42 = scmp.ne.s32.totalorder %s33, %s34
      %p43 = scmp.eq.s32.totalorder %s16, 0
      %p44 = por %p42, %p43
      %p45 = scmp.ne.s32.totalorder %s33, %s34
      %p46 = scmp.eq.s32.totalorder %s17, 1
      %p47 = por %p45, %p46
      %p49 = scmp.ne.s32.totalorder %s34, %s48
      %p50 = scmp.eq.s32.totalorder %s17, 0
      %p51 = por %p49, %p50
      %s52 = ssub.s32 %s18, %s30
      %s53 = ssub.s32 %s19, %s26
      %s54 = sor.u32 %s52, %s53
      %p55 = scmp.eq.s32.totalorder %s54, 0
      %s57 = sadd.s32 %s56, 1
      %s58 = scalar_select %p55, %s56, %s57
      %p61 = pneg %p55
      %p62 = scmp.eq.s32.totalorder %s11, 1
      %p63 = por %p61, %p62
      %p64 = scmp.ne.s32.totalorder %s56, %s59
      %p65 = scmp.eq.s32.totalorder %s11, 0
      %p66 = por %p64, %p65
      %p67 = scmp.ne.s32.totalorder %s56, %s59
      %p68 = scmp.eq.s32.totalorder %s16, 1
      %p69 = por %p67, %p68
      %p70 = scmp.ne.s32.totalorder %s59, %s60
      %p71 = scmp.eq.s32.totalorder %s16, 0
      %p72 = por %p70, %p71
      %p73 = scmp.ne.s32.totalorder %s59, %s60
      %p74 = scmp.eq.s32.totalorder %s17, 1
      %p75 = por %p73, %p74
      %p77 = scmp.ne.s32.totalorder %s60, %s76
      %p78 = scmp.eq.s32.totalorder %s17, 0
      %p79 = por %p77, %p78
      %p80 = scmp.le.s32.totalorder 1, %s11
      %p81 = scmp.lt.s32.totalorder %s11, 3
      %p82 = pnand %p80, %p81
      %p83 = pneg %p82
      // Predicated region
      $region9: #{tpu_custom_call.1} parent=5 // pred_check
        _
      $region10: #{tpu_custom_call.1} parent=5 // pred_check_branch
        %85 = sbr.rel (%p82) target = $region12
      $region11: #{tpu_custom_call.1} parent=5 // pred_region
        %s86 = ssub.s32 %s11, 1
        // Predicated region
        $region13: #{tpu_custom_call.1} parent=11 // pred_check
          %p87 = pneg %p44
        $region14: #{tpu_custom_call.1} parent=11 // pred_check_branch
          %89 = sbr.rel (%p87) target = $region16
        $region15: #{tpu_custom_call.1} parent=11 // pred_region
          %s91 = ssub.s32 16, 16
          %92 = vsyncadd [#allocation4], %s91
          %95 = dma.hbm_to_smem %s0, 16, [#allocation2], [#allocation4]
        $region16: #{tpu_custom_call.1} parent=11 // pred_fallthru
          _
      $region12: #{tpu_custom_call.1} parent=5 // pred_fallthru
        _
      %p96 = scmp.lt.s32.totalorder %s11, 2
      // Predicated region
      $region17: #{tpu_custom_call.1} parent=5 // pred_check
        %p97 = pneg %p96
      $region18: #{tpu_custom_call.1} parent=5 // pred_check_branch
        %99 = sbr.rel (%p97) target = $region20
      $region19: #{tpu_custom_call.1} parent=5 // pred_region
        _
      $region20: #{tpu_custom_call.1} parent=5 // pred_fallthru
        _
      %p100 = scmp.le.s32.totalorder 1, %s11
      %p101 = scmp.lt.s32.totalorder %s11, 3
      %p102 = pnand %p100, %p101
      %p103 = pneg %p102
      // Predicated region
      $region21: #{tpu_custom_call.1} parent=5 // pred_check
        _
      $region22: #{tpu_custom_call.1} parent=5 // pred_check_branch
        %105 = sbr.rel (%p102) target = $region24
      $region23: #{tpu_custom_call.1} parent=5 // pred_region
        %s106 = ssub.s32 %s11, 1
        // Predicated region
        $region25: #{tpu_custom_call.1} parent=23 // pred_check
          %p107 = pneg %p44
        $region26: #{tpu_custom_call.1} parent=23 // pred_check_branch
          %109 = sbr.rel (%p107) target = $region28
        $region27: #{tpu_custom_call.1} parent=23 // pred_region
          %110 = dma.done [#allocation4], 16
        $region28: #{tpu_custom_call.1} parent=23 // pred_fallthru
          _
        %111 = sfence
        %p112 = pneg %p44
        %p113 = pneg %p41
        %p114 = pneg %p72
        %p115 = pneg %p69
        %s116 = sand.u32 %s59, 1
        %s117 = scalar_lea.sflag [#allocation3], %s116
        %s118 = sand.u32 %s59, 1
        %s119 = smul.addr %s118, 32
        %s120 = scalar_lea.vmem [#allocation5], %s119
        %s121 = smul.u32 2, %s21
        %v122 = vlaneseq
        %v123 = vand.u32 %v122, 127
        %v124 = vadd.s32 %v123, 128
        %v125 = vshra.s32 %v123, 1
        %v126 = vshra.s32 %v124, 1
        %v127 = vcvt.s32.f32 %v125
        %v128 = vcvt.s32.f32 %v126
        %v129 = vand.u32 %v123, 1
        %v130 = vand.u32 %v124, 1
        %vm131 = vcmp.eq.s32.totalorder %v129, 0
        %vm132 = vcmp.eq.s32.totalorder %v130, 0
        %v133 = vlaneseq
        %v134 = vshrl.u32 %v133, 7
        %v135 = vadd.s32 %v134, 8
        %s136 = smul.u32 %s21, 16
        %v137 = vstv %s136
        %v138 = vadd.s32 %v134, %v137
        %v139 = vadd.s32 %v135, %v137
        %v140 = vcvt.s32.f32 %v138
        %v141 = vcvt.s32.f32 %v139
        %s142 = smul.u32 %s20, 6
        %s143 = sld [smem:[#allocation2 + %s142]]
        %s144 = sadd.s32 %s142, 1
        %s145 = sld [smem:[#allocation2 + %s144]]
        %s146 = sadd.s32 %s142, 2
        %s147 = sld [smem:[#allocation2 + %s146]]
        %s148 = sadd.s32 %s142, 3
        %s149 = sld [smem:[#allocation2 + %s148]]
        %s150 = sadd.s32 %s142, 4
        %s151 = sld [smem:[#allocation2 + %s150]]
        %s152 = sadd.s32 %s142, 5
        %s153 = sld [smem:[#allocation2 + %s152]]
        %s154 = smul.f32 %s143, 0.015625
        %s155 = smul.f32 %s145, 0.125
        %s156 = smul.f32 %s143, -0.9921875
        %s157 = sadd.f32 %s147, %s156
        %s158 = smul.f32 %s145, -0.9375
        %s159 = sadd.f32 %s157, %s158
        %s160 = smul.f32 %s149, 0.015625
        %s161 = smul.f32 %s151, 0.125
        %s162 = smul.f32 %s149, -0.9921875
        %s163 = sadd.f32 %s153, %s162
        %s164 = smul.f32 %s151, -0.9375
        %s165 = sadd.f32 %s163, %s164
        %v166 = vstv %s154
        %v167 = vstv %s160
        %v168 = vsel %vm131, %v166, %v167
        %v169 = vsel %vm132, %v166, %v167
        %v170 = vstv %s155
        %v171 = vstv %s161
        %v172 = vsel %vm131, %v170, %v171
        %v173 = vsel %vm132, %v170, %v171
        %v174 = vstv %s159
        %v175 = vstv %s165
        %v176 = vsel %vm131, %v174, %v175
        %v177 = vsel %vm132, %v174, %v175
        %v178 = vmul.f32 %v168, %v127
        %v179 = vmul.f32 %v169, %v128
        %v180 = vadd.f32 %v178, %v176
        %v181 = vadd.f32 %v179, %v177
        %v182 = vmul.f32 %v172, %v140
        %v183 = vmul.f32 %v173, %v140
        %v184 = vmul.f32 %v172, %v141
        %v185 = vmul.f32 %v173, %v141
        %v186 = vadd.f32 %v182, %v180
        %v187 = vadd.f32 %v183, %v181
        %v188 = vadd.f32 %v184, %v180
        %v189 = vadd.f32 %v185, %v181
        %190 = vst [vmem:[%s120] sm:$0xff] %v186
        %191 = vst [vmem:[%s120 + $0x8] sm:$0xff] %v187
        %192 = vst [vmem:[%s120 + $0x10] sm:$0xff] %v188
        %193 = vst [vmem:[%s120 + $0x18] sm:$0xff] %v189
        %s194 = sand.u32 %s59, 1
        %s195 = scalar_lea.sflag [#allocation3], %s194
        %s196 = sand.u32 %s59, 1
        %s197 = smul.addr %s196, 32
        %s198 = scalar_lea.vmem [#allocation5], %s197
        // Predicated region
        $region29: #{tpu_custom_call.1} parent=23 // pred_check
          %p199 = pneg %p69
        $region30: #{tpu_custom_call.1} parent=23 // pred_check_branch
          %201 = sbr.rel (%p199) target = $region32
        $region31: #{tpu_custom_call.1} parent=23 // pred_region
          %s202 = smul.u32 2, %s21
          %s204 = ssub.s32 512, 512
          %205 = vsyncadd %s195, %s204
          %s206 = smul.addr %s202, 2
          %s207 = smul.addr %s20, 4
          %s208 = sadd.s32 %s206, %s207
          %s209 = smul.addr %s208, 128
          %s210 = scalar_lea.hbm %s1, %s209
          %s211 = sshll.u32 %s198, 4
          %s212 = int_to_ptr.vmem [resolvable:$true] %s211
          %217 = dma.vmem_to_hbm [thread:$0]  %s212, 512, %s210, %s195, 256, 256, 16
        $region32: #{tpu_custom_call.1} parent=23 // pred_fallthru
          _
      $region24: #{tpu_custom_call.1} parent=5 // pred_fallthru
        _
      %p218 = scmp.le.s32.totalorder 2, %s11
      // Predicated region
      $region33: #{tpu_custom_call.1} parent=5 // pred_check
        %p219 = pneg %p218
      $region34: #{tpu_custom_call.1} parent=5 // pred_check_branch
        %221 = sbr.rel (%p219) target = $region36
      $region35: #{tpu_custom_call.1} parent=5 // pred_region
        %s222 = ssub.s32 %s11, 2
        // Predicated region
        $region37: #{tpu_custom_call.1} parent=35 // pred_check
          %p223 = pneg %p75
        $region38: #{tpu_custom_call.1} parent=35 // pred_check_branch
          %225 = sbr.rel (%p223) target = $region40
        $region39: #{tpu_custom_call.1} parent=35 // pred_region
          %s226 = sand.u32 %s60, 1
          %s227 = scalar_lea.sflag [#allocation3], %s226
          %s228 = sand.u32 %s60, 1
          %s229 = smul.addr %s228, 32
          %s230 = scalar_lea.vmem [#allocation5], %s229
          %231 = dma.done %s227, 512
        $region40: #{tpu_custom_call.1} parent=35 // pred_fallthru
          _
      $region36: #{tpu_custom_call.1} parent=5 // pred_fallthru
        _
    $region6: #{tpu_custom_call.1} parent=1 // loop_footer
      %s15 = sadd.s32 1, %s11
    $region7: #{tpu_custom_call.1} parent=1 // loop_footer_branch
      %10 = sbr.rel target = $region3
    $region8: #{tpu_custom_call.1} parent=1 // loop_exit
      _
    %232 = vsyncpa [#allocation3], 1
    %s233 = scalar_lea.sflag [#allocation3], 1
    %234 = vsyncpa %s233, 1
    %235 = vsyncpa [#allocation4], 1
    %s236 = scalar_lea.sflag [#allocation4], 1
    %237 = vsyncpa %s236, 1

</llo_original>
